<compile_context>
chip_gen: v7x
topology: tpu7x:2x2x1
jax: 0.10.0
libtpu: 0.0.40
codegen_flags: <defaults>
</compile_context>

<pallas_src>
import jax
import jax.numpy as jnp
import numpy as np
from jax.experimental import pallas as pl
from jax.experimental.pallas import tpu as pltpu

_LANE = 128  # vreg lane width; lane tile dims must be multiples of this


def _copy_kernel(src_ref, dst_ref):
    # Pure pass-through of the current (3, tile_n) tile (VMEM -> VMEM).
    dst_ref[...] = src_ref[...]


def _target_tile_bytes() -> int:
    """Per-generation tile budget for the copy path."""
    try:
        kind = jax.devices()[0].device_kind.lower()
    except Exception:  # pragma: no cover - defensive; fall back to safe size
        kind = ""
    if ("v6" in kind) or ("v7" in kind):
        # 32 MiB scoped-VMEM default; 4 MiB tiles (in+out, double-buffered
        # ~16 MiB live) amortize the ~0.35 us per-step overhead to <10%.
        return 4 << 20
    # v5e and unknown chips: 16 MiB scoped-VMEM default is the binding
    # constraint; 2 MiB tiles (~8 MiB live) are safe and already <15% overhead.
    return 2 << 20


def parameter_3d_pts_forward(pts_3d: jax.Array, *, copy: bool = False,
                             tile_n: int | None = None) -> jax.Array:
    """Forward pass of Parameter3DPts.

    The PyTorch forward is an identity returning the parameter, so the default
    (copy=False) short-circuits and returns `pts_3d` with zero HBM traffic.
    copy=True materializes a fresh tensor via a bandwidth-optimal Pallas copy
    of the natural (3, n_pts) layout.  `tile_n` (multiple of 128) overrides the
    auto tile size (used for testing the tiled path at small shapes).
    """
    three, n_pts = pts_3d.shape
    assert three == 3, "expected (3, n_pts) parameter"

    if not copy:
        # Highest-value optimization: don't launch a kernel for an identity.
        return pts_3d

    if tile_n is None:
        itemsize = jnp.dtype(pts_3d.dtype).itemsize
        tile_n = (_target_tile_bytes() // (three * itemsize)) // _LANE * _LANE
        tile_n = max(tile_n, _LANE)
    assert tile_n % _LANE == 0, "tile_n must be a multiple of 128"

    if n_pts <= tile_n:
        # Small parameter: whole array as a single VMEM block, no grid
        # bookkeeping.  Bounded by tile_n, so it can never blow out VMEM.
        return pl.pallas_call(
            _copy_kernel,
            out_shape=jax.ShapeDtypeStruct((three, n_pts), pts_3d.dtype),
        )(pts_3d)

    # Tiled path over the natural (3, n_pts) shape: sublane dim 3 == full
    # extent (legal), lane dim tile_n is a multiple of 128 (dense stores).
    grid = (pl.cdiv(n_pts, tile_n),)
    return pl.pallas_call(
        _copy_kernel,
        out_shape=jax.ShapeDtypeStruct((three, n_pts), pts_3d.dtype),
        grid=grid,
        in_specs=[pl.BlockSpec((three, tile_n), lambda i: (0, i))],
        out_specs=pl.BlockSpec((three, tile_n), lambda i: (0, i)),
        compiler_params=pltpu.CompilerParams(
            # Lets the v7x megacore split the copy across its two TensorCores
            # (grid >= 2 whenever this path is taken); free on v5e/v6e.
            dimension_semantics=("parallel",),
        ),
    )(pts_3d)


class Parameter3DPts:
    """JAX counterpart of the PyTorch module: owns pts_3d, forward returns it."""

    def __init__(self, n_pts: int, key: jax.Array):
        # torch.normal(mean=0, std=0.1, size=(3, n_pts))
        self.pts_3d = 0.1 * jax.random.normal(key, (3, n_pts), dtype=jnp.float32)

    def __call__(self, *, copy: bool = False) -> jax.Array:
        return parameter_3d_pts_forward(self.pts_3d, copy=copy)


if __name__ == "__main__":
    key = jax.random.PRNGKey(0)
    k1, k2 = jax.random.split(key)

    # Case 1: small, non-128-aligned parameter.
    n_pts = 300
    mod = Parameter3DPts(n_pts, k1)
    expected = np.asarray(mod.pts_3d)

    # (a) Default forward: identity short-circuit, no kernel launch.
    out_id = mod()
    np.testing.assert_array_equal(np.asarray(out_id), expected)

    # (b) Materializing forward: gridless whole-array Pallas copy.
    out_small = jax.block_until_ready(mod(copy=True))
    assert out_small.shape == (3, n_pts) and out_small.dtype == jnp.float32
    np.testing.assert_array_equal(np.asarray(out_small), expected)

    # (c) Force the tiled (3, TILE_N) path at a small shape: tile_n=128 over
    #     n_pts=300 -> grid=(3,) with a ragged final block.
    out_tiled = jax.block_until_ready(
        parameter_3d_pts_forward(mod.pts_3d, copy=True, tile_n=128))
    np.testing.assert_array_equal(np.asarray(out_tiled), expected)

    # Case 2: lane-aligned parameter through the tiled path (grid=(4,)).
    n_pts2 = 512
    mod2 = Parameter3DPts(n_pts2, k2)
    expected2 = np.asarray(mod2.pts_3d)
    out2 = jax.block_until_ready(
        parameter_3d_pts_forward(mod2.pts_3d, copy=True, tile_n=128))
    assert out2.shape == (3, n_pts2) and out2.dtype == jnp.float32
    np.testing.assert_array_equal(np.asarray(out2), expected2)

    print("KERNEL_OK")
</pallas_src>

<mosaic_0001>
module attributes {stable_mosaic.version = 11 : i64} {
  func.func @_copy_kernel(%arg0: memref<3x300xf32, #tpu.memory_space<vmem>>, %arg1: memref<3x300xf32, #tpu.memory_space<vmem>>) attributes {dimension_semantics = [], scalar_prefetch = 0 : i64, scratch_operands = 0 : i64, tpu.core_type = #tpu.core_type<tc>} {
    %c0 = arith.constant 0 : index
    %c0_0 = arith.constant 0 : index
    %0 = vector.load %arg0[%c0, %c0_0] : memref<3x300xf32, #tpu.memory_space<vmem>>, vector<3x300xf32>
    %c0_1 = arith.constant 0 : index
    %c0_2 = arith.constant 0 : index
    %1 = vector.load %arg1[%c0_1, %c0_2] : memref<3x300xf32, #tpu.memory_space<vmem>>, vector<3x300xf32>
    tpu.vector_store %arg1[%c0_1, %c0_2], %0 {strides = array<i32>} : memref<3x300xf32, #tpu.memory_space<vmem>>, vector<3x300xf32>,
    return
  }
}

</mosaic_0001>

<llo_original>
// kernel: tpu_custom_call.1
$region0: #{tpu_custom_call.1}
  #allocation0 [shape = 'u32[]', space=smem, size = 0x4, offset = 0x4, fixed_abs, tag = 'smem constant byte address 0x4 - core index']
  #allocation1 [shape = 'u32[144,128]{1,0:T(1,128)}', space=vmem, size = 0x12000, scoped, tag = 'internal scratch']
  %s0 = inlined_call_operand.hbm [shape: f32[3,300], index: 0, kind: input, shape index: {}]
  %s1 = inlined_call_operand.hbm [shape: f32[3,300], index: 1, kind: output, shape index: {}]
  %s2 = sld [smem:[#allocation0]]
  $region18: #{tpu_custom_call.1} parent=0
    _
  %s4 = ssub.s32 1, %s2
  %s5 = scalar_select 0, %s4, %s2
  $region1: #{tpu_custom_call.1} parent=0
    #allocation2 [shape = 'u8[6144]{0}', space=vmem, size = 0x1800, scoped, tag = 'input window, operand 0, single buffered']
    #allocation3 [shape = 's32[1]{0}', space=sflag, size = 0x4, scoped, tag = 'scoped memory for tpu_custom_call.1']
    #allocation4 [shape = 's32[1]{0}', space=sflag, size = 0x4, scoped, tag = 'scoped memory for tpu_custom_call.1']
    #allocation5 [shape = 'u8[6144]{0}', space=vmem, size = 0x1800, scoped, tag = 'output window, operand 0, single buffered']
    %6 = vsyncpa [#allocation3], 0
    %7 = vsyncpa [#allocation4], 0
    // Predicated region
    $region2: #{tpu_custom_call.1} parent=1 // pred_check
      _
    $region3: #{tpu_custom_call.1} parent=1 // pred_check_branch
      %9 = sbr.rel (0) target = $region5
    $region4: #{tpu_custom_call.1} parent=1 // pred_region
      %s11 = ssub.s32 192, 192
      %12 = vsyncadd [#allocation3], %s11
      %s14 = sshll.u32 [#allocation2], 4
      %s15 = int_to_ptr.vmem [resolvable:$true] %s14
      %17 = dma.hbm_to_vmem [thread:$0]  %s0, 192, %s15, [#allocation3]
    $region5: #{tpu_custom_call.1} parent=1 // pred_fallthru
      _
    // Predicated region
    $region6: #{tpu_custom_call.1} parent=1 // pred_check
      _
    $region7: #{tpu_custom_call.1} parent=1 // pred_check_branch
      %19 = sbr.rel (0) target = $region9
    $region8: #{tpu_custom_call.1} parent=1 // pred_region
      %20 = dma.done [#allocation3], 192
    $region9: #{tpu_custom_call.1} parent=1 // pred_fallthru
      _
    %v21 = vld [vmem:[#allocation2] sm:$0x77]
    %v22 = vld [vmem:[#allocation2 + $0x8] sm:$0x7]
    %23 = vst [vmem:[#allocation5] sm:$0x77] %v21
    %vm24 = vcmask 354304
    %25 = vst.msk [vmem:[#allocation5 + $0x8] sm:$0x7] %vm24, %v22
    // Predicated region
    $region10: #{tpu_custom_call.1} parent=1 // pred_check
      _
    $region11: #{tpu_custom_call.1} parent=1 // pred_check_branch
      %27 = sbr.rel (0) target = $region13
    $region12: #{tpu_custom_call.1} parent=1 // pred_region
      %s29 = ssub.s32 192, 192
      %30 = vsyncadd [#allocation4], %s29
      %s32 = sshll.u32 [#allocation5], 4
      %s33 = int_to_ptr.vmem [resolvable:$true] %s32
      %35 = dma.vmem_to_hbm [thread:$0]  %s33, 192, %s1, [#allocation4]
    $region13: #{tpu_custom_call.1} parent=1 // pred_fallthru
      _
    // Predicated region
    $region14: #{tpu_custom_call.1} parent=1 // pred_check
      _
    $region15: #{tpu_custom_call.1} parent=1 // pred_check_branch
      %37 = sbr.rel (0) target = $region17
    $region16: #{tpu_custom_call.1} parent=1 // pred_region
      %38 = dma.done [#allocation4], 192
    $region17: #{tpu_custom_call.1} parent=1 // pred_fallthru
      _
    %39 = vsyncpa [#allocation3], 1
    %40 = vsyncpa [#allocation4], 1

</llo_original>
